<compile_context>
chip_gen: v5e
topology: v5e:2x2
jax: 0.10.0
libtpu: 0.0.40
codegen_flags: <defaults>
</compile_context>

<pallas_src>
import functools
import math

import jax
import jax.numpy as jnp
from jax.experimental import pallas as pl
from jax.experimental.pallas import tpu as pltpu


_LANE_CHOICES = (1024, 512, 256, 128)     # widest lane-dense slab first
_TARGET_BLOCK_BYTES = 4 * 1024 * 1024     # ~4 MiB per block (fits all gens)


def _soft_round_kernel(x_ref, o_ref, *, alpha, inv_z):
    # NOTE: the trailing partial grid block may load rows past the logical
    # array extent (stale VMEM).  floor/tanh of that garbage is harmless
    # because Pallas masks the output store to the valid region — do not turn
    # this into an unmasked manual store in a future refactor.
    x = x_ref[...].astype(jnp.float32)      # compute in f32, cast only on store
    m = jnp.floor(x) + 0.5
    r = x - m
    y = m + jnp.tanh(alpha * r) * inv_z
    o_ref[...] = y.astype(o_ref.dtype)


def _soft_round_jnp(x, alpha, inv_z):
    """Tiny fallback for the <128-element ragged tail (pure jnp)."""
    xf = x.astype(jnp.float32)
    m = jnp.floor(xf) + 0.5
    r = xf - m
    return (m + jnp.tanh(alpha * r) * inv_z).astype(x.dtype)


def _soft_round_slab(x2d, alpha, inv_z):
    """Run the Pallas kernel over a lane-dense (rows, lanes) slab."""
    rows, lanes = x2d.shape
    dtype = x2d.dtype
    itemsize = jnp.dtype(dtype).itemsize

    # Second-minor tile multiple: 8 sublanes for f32, 16 for bf16/f16, ...
    sublane = 8 * max(1, 4 // itemsize)

    block_rows = max(_TARGET_BLOCK_BYTES // (lanes * itemsize), sublane)
    block_rows = (block_rows // sublane) * sublane
    if block_rows >= rows:
        block_rows = rows                      # full-extent block is always legal
    nblocks = pl.cdiv(rows, block_rows)

    # v7x megacore: prefer >= 2 blocks when there are enough rows so both
    # TensorCores stream; harmless on single-TC v5e/v6e.
    if nblocks == 1 and rows >= 2 * sublane:
        block_rows = sublane * pl.cdiv(pl.cdiv(rows, 2), sublane)
        nblocks = pl.cdiv(rows, block_rows)

    block_bytes = block_rows * lanes * itemsize
    # Explicit VMEM budget: double-buffered in + out (4 x block) + headroom,
    # kept below v7x's 64 MiB physical VMEM.
    vmem_limit = int(min(64 << 20, max(16 << 20, 4 * block_bytes + (8 << 20))))

    n = rows * lanes
    cost = pl.CostEstimate(
        flops=6 * n,
        transcendentals=n,
        bytes_accessed=2 * n * itemsize,
    )

    kernel = functools.partial(_soft_round_kernel, alpha=alpha, inv_z=inv_z)
    return pl.pallas_call(
        kernel,
        out_shape=jax.ShapeDtypeStruct((rows, lanes), dtype),
        grid=(nblocks,),
        in_specs=[pl.BlockSpec((block_rows, lanes), lambda i: (i, 0))],
        out_specs=pl.BlockSpec((block_rows, lanes), lambda i: (i, 0)),
        compiler_params=pltpu.CompilerParams(
            dimension_semantics=("parallel",),
            vmem_limit_bytes=vmem_limit,
        ),
        cost_estimate=cost,
    )(x2d)


@functools.partial(jax.jit, static_argnames=("alpha", "inv_z"))
def _soft_round_forward(x, *, alpha, inv_z):
    if not jnp.issubdtype(x.dtype, jnp.floating):
        raise TypeError(
            f"CrimeCountSoftRound expects a floating-point input, got {x.dtype}"
        )

    orig_shape = x.shape
    total = math.prod(orig_shape)
    if total == 0:
        return x

    x_flat = x.reshape(-1)

    lanes = None
    for c in _LANE_CHOICES:
        if total % c == 0:
            lanes = c
            break

    if lanes is not None:
        y2d = _soft_round_slab(x_flat.reshape(total // lanes, lanes), alpha, inv_z)
        return y2d.reshape(orig_shape)

    # Ragged total: kernel on the 128-aligned prefix, plain jnp on the tiny
    # (<128 element) tail.  Avoids a full-array pad + slice round-trip.
    lanes = 128
    prefix = (total // lanes) * lanes
    tail = _soft_round_jnp(x_flat[prefix:], alpha, inv_z)
    if prefix == 0:
        y_flat = tail
    else:
        head = _soft_round_slab(
            x_flat[:prefix].reshape(prefix // lanes, lanes), alpha, inv_z
        ).reshape(-1)
        y_flat = jnp.concatenate([head, tail])
    return y_flat.reshape(orig_shape)


class CrimeCountSoftRound:
    """JAX/Pallas port of the PyTorch CrimeCountSoftRound module."""

    def __init__(self, alpha, eps=0.001, seed=0):
        self.alpha = float(alpha)
        self.eps = float(eps)
        assert self.alpha >= self.eps, "alpha must be >= eps"
        # Precompute 1 / (2 * tanh(alpha / 2)) in float64 Python.
        self.inv_z = 1.0 / (2.0 * math.tanh(self.alpha / 2.0))
        # Parity with the torch module's (unused-in-forward) parameter b.
        self.b = jnp.asarray(
            jax.random.randint(jax.random.PRNGKey(seed), (1,), 0, 3), jnp.float32
        )

    def __call__(self, x):
        return _soft_round_forward(x, alpha=self.alpha, inv_z=self.inv_z)


def _reference(x, alpha):
    m = jnp.floor(x) + 0.5
    r = x - m
    z = jnp.tanh(alpha / 2.0) * 2.0
    return m + jnp.tanh(alpha * r) / z


if __name__ == "__main__":
    mod = CrimeCountSoftRound(alpha=4.0)

    # Small NCHW input, matching the PyTorch convention (2048 elems -> aligned path).
    x = jax.random.normal(jax.random.PRNGKey(0), (2, 4, 16, 16), jnp.float32) * 5.0
    y = jax.block_until_ready(mod(x))
    assert y.shape == x.shape and y.dtype == x.dtype
    assert jnp.allclose(y, _reference(x, 4.0), atol=1e-5, rtol=1e-5)

    # Ragged shape (3*5*17*13 = 3315 -> 3200-elem prefix kernel + 115-elem jnp tail).
    x2 = jax.random.normal(jax.random.PRNGKey(1), (3, 5, 17, 13), jnp.float32) * 3.0
    y2 = jax.block_until_ready(mod(x2))
    assert y2.shape == x2.shape and y2.dtype == x2.dtype
    assert jnp.allclose(y2, _reference(x2, 4.0), atol=1e-5, rtol=1e-5)

    # bf16 storage: kernel computes in f32 in-register, casts only the store.
    x3 = jax.random.normal(jax.random.PRNGKey(2), (2, 4, 16, 16), jnp.float32) * 5.0
    x3b = x3.astype(jnp.bfloat16)
    y3 = jax.block_until_ready(mod(x3b))
    assert y3.dtype == jnp.bfloat16 and y3.shape == x3b.shape
    y3_ref = _reference(x3b.astype(jnp.float32), 4.0)
    assert jnp.allclose(y3.astype(jnp.float32), y3_ref, atol=1e-1, rtol=1e-2)

    print("KERNEL_OK")
</pallas_src>

<mosaic_0001>
module attributes {stable_mosaic.version = 11 : i64} {
  func.func @_soft_round_kernel(%arg0: i32, %arg1: memref<2x1024xf32, #tpu.memory_space<vmem>>, %arg2: memref<2x1024xf32, #tpu.memory_space<vmem>>) attributes {dimension_semantics = [#tpu.dimension_semantics<parallel>], iteration_bounds = array<i64: 1>, scalar_prefetch = 0 : i64, scratch_operands = 0 : i64, tpu.core_type = #tpu.core_type<tc>, window_params = [{transform_indices = @transform_0, window_bounds = array<i64: 2, 1024>}, {transform_indices = @transform_1, window_bounds = array<i64: 2, 1024>}]} {
    %c0 = arith.constant 0 : index
    %c0_0 = arith.constant 0 : index
    %0 = vector.load %arg1[%c0, %c0_0] : memref<2x1024xf32, #tpu.memory_space<vmem>>, vector<2x1024xf32>
    %1 = math.floor %0 : vector<2x1024xf32>
    %cst = arith.constant 5.000000e-01 : f32
    %2 = vector.broadcast %cst : f32 to vector<2x1024xf32>
    %3 = arith.addf %1, %2 : vector<2x1024xf32>
    %4 = arith.subf %0, %3 : vector<2x1024xf32>
    %cst_1 = arith.constant 4.000000e+00 : f32
    %5 = vector.broadcast %cst_1 : f32 to vector<2x1024xf32>
    %6 = arith.mulf %5, %4 : vector<2x1024xf32>
    %7 = math.tanh %6 : vector<2x1024xf32>
    %cst_2 = arith.constant 0.518657386 : f32
    %8 = vector.broadcast %cst_2 : f32 to vector<2x1024xf32>
    %9 = arith.mulf %7, %8 : vector<2x1024xf32>
    %10 = arith.addf %3, %9 : vector<2x1024xf32>
    %c0_3 = arith.constant 0 : index
    %c0_4 = arith.constant 0 : index
    %11 = vector.load %arg2[%c0_3, %c0_4] : memref<2x1024xf32, #tpu.memory_space<vmem>>, vector<2x1024xf32>
    tpu.vector_store %arg2[%c0_3, %c0_4], %10 {strides = array<i32>} : memref<2x1024xf32, #tpu.memory_space<vmem>>, vector<2x1024xf32>,
    return
  }
  func.func @transform_0(%arg0: i32) -> (i32, i32) {
    %c0_i32 = arith.constant 0 : i32
    %c0_i32_0 = arith.constant 0 : i32
    return %arg0, %c0_i32 : i32, i32
  }
  func.func @transform_1(%arg0: i32) -> (i32, i32) {
    %c0_i32 = arith.constant 0 : i32
    %c0_i32_0 = arith.constant 0 : i32
    return %arg0, %c0_i32 : i32, i32
  }
}

</mosaic_0001>

<llo_original>
// kernel: _soft_round_forward.1
$region0: #{_soft_round_forward.1}
  #allocation0 [shape = 'u32[]', space=smem, size = 0x4, offset = 0x4, fixed_abs, tag = 'smem constant byte address 0x4 - core index']
  #allocation1 [shape = 'u32[72,128]{1,0:T(1,128)}', space=vmem, size = 0x9000, scoped, tag = 'internal scratch']
  %s0 = inlined_call_operand.vmem [shape: f32[2,1024], index: 0, kind: input, shape index: {}]
  %s1 = inlined_call_operand.vmem [shape: f32[2,1024], index: 1, kind: output, shape index: {}]
  %s2 = sld [smem:[#allocation0]]
  $region14: #{_soft_round_forward.1} parent=0
    _
  %s4 = ssub.s32 1, %s2
  %s5 = scalar_select 0, %s4, %s2
  // Predicated region
  $region2: #{_soft_round_forward.1} parent=0 // pred_check
    _
  $region3: #{_soft_round_forward.1} parent=0 // pred_check_branch
    %7 = sbr.rel (0) target = $region5
  $region4: #{_soft_round_forward.1} parent=0 // pred_region
    _
  $region5: #{_soft_round_forward.1} parent=0 // pred_fallthru
    _
  %v8 = vld [vmem:[%s0] sm:$0xff]
  %v9 = vld [vmem:[%s0 + $0x8] sm:$0xff]
  %v10 = vfloor.f32 %v8
  %v11 = vfloor.f32 %v9
  %v12 = vadd.f32 %v10, 0.5
  %v13 = vadd.f32 %v11, 0.5
  %v14 = vsub.f32 %v8, %v12
  %v15 = vsub.f32 %v9, %v13
  %v16 = vmul.f32 %v14, 4.0
  %v17 = vmul.f32 %v15, 4.0
  %v18 = vtanh.pop %v16
  %v19 = vtanh.pop %v17
  %v20 = vmul.f32 %v18, 0.5186574
  %v21 = vmul.f32 %v19, 0.5186574
  %v22 = vadd.f32 %v12, %v20
  %v23 = vadd.f32 %v13, %v21
  %24 = vst [vmem:[%s1] sm:$0xff] %v22
  %25 = vst [vmem:[%s1 + $0x8] sm:$0xff] %v23
  // Predicated region
  $region6: #{_soft_round_forward.1} parent=0 // pred_check
    _
  $region7: #{_soft_round_forward.1} parent=0 // pred_check_branch
    %27 = sbr.rel (0) target = $region9
  $region8: #{_soft_round_forward.1} parent=0 // pred_region
    _
  $region9: #{_soft_round_forward.1} parent=0 // pred_fallthru
    _
  // Predicated region
  $region10: #{_soft_round_forward.1} parent=0 // pred_check
    _
  $region11: #{_soft_round_forward.1} parent=0 // pred_check_branch
    %29 = sbr.rel (0) target = $region13
  $region12: #{_soft_round_forward.1} parent=0 // pred_region
    _
  $region13: #{_soft_round_forward.1} parent=0 // pred_fallthru
    _

</llo_original>
